<compile_context>
chip_gen: v5e
topology: v5e:2x2
jax: 0.10.0
libtpu: 0.0.40
codegen_flags: <defaults>
</compile_context>

<pallas_src>
import functools

import jax
import jax.numpy as jnp
from jax.experimental import pallas as pl
from jax.experimental.pallas import tpu as pltpu


def _round_up(a, b):
    return ((a + b - 1) // b) * b


def _early_exit_kernel(x_ref, w_ref, b_ref, out_ref):
    # x_ref: (TN, CHW) input dtype; w_ref: (CHW, KP) bf16; b_ref: (1, KP) f32
    # Cast the x tile to bf16 in-kernel (VPU op, overlapped with the tile DMA)
    # so the dot runs as native bf16 x bf16 -> f32 on the MXU; accumulation
    # stays f32 via preferred_element_type.
    x_bf = x_ref[...].astype(jnp.bfloat16)
    out_ref[...] = (
        jnp.dot(x_bf, w_ref[...], preferred_element_type=jnp.float32)
        + b_ref[...]
    )


@functools.partial(jax.jit, static_argnames=("eps",))
def early_exit_block(x_nchw, gamma, beta, running_mean, running_var,
                     lin_w, lin_b, eps=1e-5):
    """x_nchw: (N, C, H, W). lin_w: (n_classes, C) (PyTorch layout), lin_b: (n_classes,)."""
    N, C, H, W = x_nchw.shape
    K = lin_b.shape[0]
    HW = H * W
    CHW = C * HW

    # ---- Trace-time algebra: fold eval-mode BN + avg-pool into the Linear. ----
    inv_std = 1.0 / jnp.sqrt(running_var.astype(jnp.float32) + eps)
    scale = gamma.astype(jnp.float32) * inv_std                       # (C,)
    shift = beta.astype(jnp.float32) - running_mean.astype(jnp.float32) * scale

    w = lin_w.T.astype(jnp.float32)                                   # (C, K)
    w_eff = (scale[:, None] * w) / jnp.float32(HW)                    # (C, K)
    w_big = jnp.repeat(w_eff, HW, axis=0)                             # (C*HW, K)
    b_eff = shift @ w + lin_b.astype(jnp.float32)                     # (K,)

    # ---- TPU-friendly shapes / tile sizing ----
    KP = _round_up(max(K, 1), 128)                 # lane-dense output
    itemsize = jnp.dtype(x_nchw.dtype).itemsize

    # Largest row tile that fits a conservative VMEM budget (safe for v5e's
    # 16 MiB default scoped VMEM), capped at 512 rows; split the batch >= 2
    # ways when it is big enough so both v7x TensorCores get grid work.
    VMEM_BUDGET = 12 * 1024 * 1024
    fixed = 2 * CHW * KP * 2 + 2 * KP * 4          # bf16 weight + f32 bias buffers
    per_row = 2 * (CHW * itemsize + KP * 4)        # x + out double-buffers per row
    cap = max(8, min(512, ((VMEM_BUDGET - fixed) // per_row) // 8 * 8))
    rows_per_core = pl.cdiv(N, 2) if N > 8 else N
    TN = min(cap, _round_up(max(rows_per_core, 1), 8))
    grid_n = pl.cdiv(N, TN)
    NP = grid_n * TN                               # padded output rows (writes stay full blocks)

    # No batch-padding copy of x: the last block reads past N (garbage rows),
    # but each output row only uses its own x row and padded rows are sliced off.
    x_flat = x_nchw.reshape(N, CHW)

    w_pad = jnp.zeros((CHW, KP), jnp.bfloat16).at[:, :K].set(w_big.astype(jnp.bfloat16))
    b_pad = jnp.zeros((1, KP), jnp.float32).at[0, :K].set(b_eff)

    cost = pl.CostEstimate(
        flops=2 * NP * CHW * KP,
        transcendentals=0,
        bytes_accessed=N * CHW * itemsize + CHW * KP * 2 + NP * KP * 4 + KP * 4,
    )

    out_pad = pl.pallas_call(
        _early_exit_kernel,
        out_shape=jax.ShapeDtypeStruct((NP, KP), jnp.float32),
        grid_spec=pltpu.PrefetchScalarGridSpec(
            num_scalar_prefetch=0,
            grid=(grid_n,),
            in_specs=[
                pl.BlockSpec((TN, CHW), lambda i: (i, 0)),
                pl.BlockSpec((CHW, KP), lambda i: (0, 0)),
                pl.BlockSpec((1, KP), lambda i: (0, 0)),
            ],
            out_specs=pl.BlockSpec((TN, KP), lambda i: (i, 0)),
        ),
        compiler_params=pltpu.CompilerParams(
            dimension_semantics=("parallel",)),
        cost_estimate=cost,
    )(x_flat, w_pad, b_pad)

    return out_pad[:N, :K]


def _reference(x_nchw, gamma, beta, running_mean, running_var, lin_w, lin_b, eps=1e-5):
    # Plain-JAX f32 reference of the same forward for a correctness check.
    xn = (x_nchw - running_mean[None, :, None, None]) / jnp.sqrt(
        running_var[None, :, None, None] + eps)
    xn = xn * gamma[None, :, None, None] + beta[None, :, None, None]
    pooled = jnp.mean(xn, axis=(2, 3))              # (N, C)
    return pooled @ lin_w.T + lin_b[None, :]


if __name__ == "__main__":
    # Small shapes consistent with the module: batch=2, channels=4, spatial=16x16, n_classes=10
    C, H, W = 4, 16, 16
    n_classes = 10

    key = jax.random.PRNGKey(0)
    kx, kw, kb, kx2 = jax.random.split(key, 4)

    # Deterministic BatchNorm2d parameters / running stats (eval mode)
    gamma = 1.0 + 0.1 * jnp.arange(C, dtype=jnp.float32)
    beta = 0.05 * jnp.arange(C, dtype=jnp.float32)
    running_mean = 0.01 * jnp.arange(C, dtype=jnp.float32)
    running_var = 1.0 + 0.02 * jnp.arange(C, dtype=jnp.float32)

    # Deterministic Linear(C -> n_classes) parameters (PyTorch layout: (out, in))
    lin_w = 0.1 * jax.random.normal(kw, (n_classes, C), dtype=jnp.float32)
    lin_b = 0.01 * jax.random.normal(kb, (n_classes,), dtype=jnp.float32)

    # Test 1: tiny batch (single partial grid block).
    N = 2
    x = jax.random.normal(kx, (N, C, H, W), dtype=jnp.float32)
    out = jax.block_until_ready(
        early_exit_block(x, gamma, beta, running_mean, running_var, lin_w, lin_b))
    ref = _reference(x, gamma, beta, running_mean, running_var, lin_w, lin_b)
    assert out.shape == (N, n_classes)
    assert jnp.allclose(out, ref, atol=5e-3, rtol=5e-3), "mismatch vs reference (N=2)"

    # Test 2: non-multiple batch exercising multiple grid steps + masked last block.
    N2 = 20
    x2 = jax.random.normal(kx2, (N2, C, H, W), dtype=jnp.float32)
    out2 = jax.block_until_ready(
        early_exit_block(x2, gamma, beta, running_mean, running_var, lin_w, lin_b))
    ref2 = _reference(x2, gamma, beta, running_mean, running_var, lin_w, lin_b)
    assert out2.shape == (N2, n_classes)
    assert jnp.allclose(out2, ref2, atol=5e-3, rtol=5e-3), "mismatch vs reference (N=20)"

    print("KERNEL_OK")
</pallas_src>

<mosaic_0001>
module attributes {stable_mosaic.version = 11 : i64} {
  func.func @_early_exit_kernel(%arg0: i32, %arg1: memref<8x1024xf32, #tpu.memory_space<vmem>>, %arg2: memref<1024x128xbf16, #tpu.memory_space<vmem>>, %arg3: memref<1x128xf32, #tpu.memory_space<vmem>>, %arg4: memref<8x128xf32, #tpu.memory_space<vmem>>) attributes {dimension_semantics = [#tpu.dimension_semantics<parallel>], iteration_bounds = array<i64: 1>, scalar_prefetch = 0 : i64, scratch_operands = 0 : i64, tpu.core_type = #tpu.core_type<tc>, window_params = [{transform_indices = @transform_0, window_bounds = array<i64: 8, 1024>}, {pipeline_mode = #tpu.pipeline_mode<synchronous>, transform_indices = @transform_1, window_bounds = array<i64: 1024, 128>}, {pipeline_mode = #tpu.pipeline_mode<synchronous>, transform_indices = @transform_2, window_bounds = array<i64: 1, 128>}, {transform_indices = @transform_3, window_bounds = array<i64: 8, 128>}]} {
    %c0 = arith.constant 0 : index
    %c0_0 = arith.constant 0 : index
    %0 = vector.load %arg1[%c0, %c0_0] : memref<8x1024xf32, #tpu.memory_space<vmem>>, vector<8x1024xf32>
    %1 = arith.truncf %0 : vector<8x1024xf32> to vector<8x1024xbf16>
    %c0_1 = arith.constant 0 : index
    %c0_2 = arith.constant 0 : index
    %2 = vector.load %arg2[%c0_1, %c0_2] : memref<1024x128xbf16, #tpu.memory_space<vmem>>, vector<1024x128xbf16>
    %cst = arith.constant dense<0.000000e+00> : vector<8x128xf32>
    %3 = tpu.matmul %1, %2, %cst {dimension_numbers = #tpu.dot_dimension_numbers<[1], [0], [0], [1], [0, 0, 1, 1], [], []>} : vector<8x1024xbf16>, vector<1024x128xbf16>, vector<8x128xf32> -> vector<8x128xf32>
    %c0_3 = arith.constant 0 : index
    %c0_4 = arith.constant 0 : index
    %4 = vector.load %arg3[%c0_3, %c0_4] : memref<1x128xf32, #tpu.memory_space<vmem>>, vector<1x128xf32>
    %5 = vector.broadcast %4 : vector<1x128xf32> to vector<8x128xf32>
    %6 = arith.addf %3, %5 : vector<8x128xf32>
    %c0_5 = arith.constant 0 : index
    %c0_6 = arith.constant 0 : index
    %7 = vector.load %arg4[%c0_5, %c0_6] : memref<8x128xf32, #tpu.memory_space<vmem>>, vector<8x128xf32>
    tpu.vector_store %arg4[%c0_5, %c0_6], %6 {strides = array<i32>} : memref<8x128xf32, #tpu.memory_space<vmem>>, vector<8x128xf32>,
    return
  }
  func.func @transform_0(%arg0: i32) -> (i32, i32) {
    %c0_i32 = arith.constant 0 : i32
    %c0_i32_0 = arith.constant 0 : i32
    return %arg0, %c0_i32 : i32, i32
  }
  func.func @transform_1(%arg0: i32) -> (i32, i32) {
    %c0_i32 = arith.constant 0 : i32
    %c0_i32_0 = arith.constant 0 : i32
    %c0_i32_1 = arith.constant 0 : i32
    return %c0_i32, %c0_i32_0 : i32, i32
  }
  func.func @transform_2(%arg0: i32) -> (i32, i32) {
    %c0_i32 = arith.constant 0 : i32
    %c0_i32_0 = arith.constant 0 : i32
    %c0_i32_1 = arith.constant 0 : i32
    return %c0_i32, %c0_i32_0 : i32, i32
  }
  func.func @transform_3(%arg0: i32) -> (i32, i32) {
    %c0_i32 = arith.constant 0 : i32
    %c0_i32_0 = arith.constant 0 : i32
    return %arg0, %c0_i32 : i32, i32
  }
}

</mosaic_0001>

<llo_original>
// kernel: early_exit_block.1
$region0: #{early_exit_block.1}
  #allocation0 [shape = 'u32[]', space=smem, size = 0x4, offset = 0x4, fixed_abs, tag = 'smem constant byte address 0x4 - core index']
  #allocation1 [shape = 'u32[72,128]{1,0:T(1,128)}', space=vmem, size = 0x9000, scoped, tag = 'internal scratch']
  %s0 = inlined_call_operand.vmem [shape: f32[2,1024], index: 0, kind: input, shape index: {}]
  %s1 = inlined_call_operand.vmem [shape: bf16[1024,128], index: 1, kind: input, shape index: {}]
  %s2 = inlined_call_operand.vmem [shape: f32[1,128], index: 2, kind: input, shape index: {}]
  %s3 = inlined_call_operand.vmem [shape: f32[8,128], index: 3, kind: output, shape index: {}]
  %s4 = sld [smem:[#allocation0]]
  $region22: #{early_exit_block.1} parent=0
    _
  %s6 = ssub.s32 1, %s4
  %s7 = scalar_select 0, %s6, %s4
  // Predicated region
  $region2: #{early_exit_block.1} parent=0 // pred_check
    _
  $region3: #{early_exit_block.1} parent=0 // pred_check_branch
    %9 = sbr.rel (0) target = $region5
  $region4: #{early_exit_block.1} parent=0 // pred_region
    _
  $region5: #{early_exit_block.1} parent=0 // pred_fallthru
    _
  // Predicated region
  $region6: #{early_exit_block.1} parent=0 // pred_check
    _
  $region7: #{early_exit_block.1} parent=0 // pred_check_branch
    %11 = sbr.rel (0) target = $region9
  $region8: #{early_exit_block.1} parent=0 // pred_region
    _
  $region9: #{early_exit_block.1} parent=0 // pred_fallthru
    _
  // Predicated region
  $region10: #{early_exit_block.1} parent=0 // pred_check
    _
  $region11: #{early_exit_block.1} parent=0 // pred_check_branch
    %13 = sbr.rel (0) target = $region13
  $region12: #{early_exit_block.1} parent=0 // pred_region
    _
  $region13: #{early_exit_block.1} parent=0 // pred_fallthru
    _
  %v14 = vld [vmem:[%s0] sm:$0xff]
  %v15 = vld [vmem:[%s0 + $0x8] sm:$0xff]
  %v16 = vld [vmem:[%s0 + $0x10] sm:$0xff]
  %v17 = vld [vmem:[%s0 + $0x18] sm:$0xff]
  %v18 = vld [vmem:[%s0 + $0x20] sm:$0xff]
  %v19 = vld [vmem:[%s0 + $0x28] sm:$0xff]
  %v20 = vld [vmem:[%s0 + $0x30] sm:$0xff]
  %v21 = vld [vmem:[%s0 + $0x38] sm:$0xff]
  %30 = vst [vmem:[#allocation1] ss:$4 sm:$0xff] %v14
  %s31 = scalar_lea.vmem [#allocation1], 1
  %32 = vst [vmem:[%s31] ss:$4 sm:$0xff] %v16
  %s33 = scalar_lea.vmem [#allocation1], 2
  %34 = vst [vmem:[%s33] ss:$4 sm:$0xff] %v18
  %s35 = scalar_lea.vmem [#allocation1], 3
  %36 = vst [vmem:[%s35] ss:$4 sm:$0xff] %v20
  %s37 = scalar_lea.vmem [#allocation1], 32
  %38 = vst [vmem:[%s37] ss:$4 sm:$0xff] %v15
  %s39 = scalar_lea.vmem [#allocation1], 33
  %40 = vst [vmem:[%s39] ss:$4 sm:$0xff] %v17
  %s41 = scalar_lea.vmem [#allocation1], 34
  %42 = vst [vmem:[%s41] ss:$4 sm:$0xff] %v19
  %s43 = scalar_lea.vmem [#allocation1], 35
  %44 = vst [vmem:[%s43] ss:$4 sm:$0xff] %v21
  %v45 = vld.sshfl [vmem:[#allocation1] sm:$0xff pattern:$0x73625140]
  %v46 = vld.sshfl [vmem:[#allocation1 + $0x8] sm:$0xff pattern:$0x73625140]
  %v47 = vld.sshfl [vmem:[#allocation1 + $0x10] sm:$0xff pattern:$0x73625140]
  %v48 = vld.sshfl [vmem:[#allocation1 + $0x18] sm:$0xff pattern:$0x73625140]
  %v49 = vld.sshfl [vmem:[#allocation1 + $0x20] sm:$0xff pattern:$0x73625140]
  %v50 = vld.sshfl [vmem:[#allocation1 + $0x28] sm:$0xff pattern:$0x73625140]
  %v51 = vld.sshfl [vmem:[#allocation1 + $0x30] sm:$0xff pattern:$0x73625140]
  %v52 = vld.sshfl [vmem:[#allocation1 + $0x38] sm:$0xff pattern:$0x73625140]
  %v61 = vpack.c.bf16 %v45, %v45
  %v62 = vpack.c.bf16 %v46, %v46
  %v63 = vpack.c.bf16 %v47, %v47
  %v64 = vpack.c.bf16 %v48, %v48
  %v65 = vpack.c.bf16 %v49, %v49
  %v66 = vpack.c.bf16 %v50, %v50
  %v67 = vpack.c.bf16 %v51, %v51
  %v68 = vpack.c.bf16 %v52, %v52
  %v69 = vld [vmem:[%s1] sm:$0xf]
  %v70 = vld [vmem:[%s1 + $0x4] sm:$0xf]
  %v71 = vld [vmem:[%s1 + $0x8] sm:$0xf]
  %v72 = vld [vmem:[%s1 + $0xc] sm:$0xf]
  %v73 = vld [vmem:[%s1 + $0x10] sm:$0xf]
  %v74 = vld [vmem:[%s1 + $0x14] sm:$0xf]
  %v75 = vld [vmem:[%s1 + $0x18] sm:$0xf]
  %v76 = vld [vmem:[%s1 + $0x1c] sm:$0xf]
  %v77 = vld [vmem:[%s1 + $0x20] sm:$0xf]
  %v78 = vld [vmem:[%s1 + $0x24] sm:$0xf]
  %v79 = vld [vmem:[%s1 + $0x28] sm:$0xf]
  %v80 = vld [vmem:[%s1 + $0x2c] sm:$0xf]
  %v81 = vld [vmem:[%s1 + $0x30] sm:$0xf]
  %v82 = vld [vmem:[%s1 + $0x34] sm:$0xf]
  %v83 = vld [vmem:[%s1 + $0x38] sm:$0xf]
  %v84 = vld [vmem:[%s1 + $0x3c] sm:$0xf]
  %v85 = vld [vmem:[%s1 + $0x40] sm:$0xf]
  %v86 = vld [vmem:[%s1 + $0x44] sm:$0xf]
  %v87 = vld [vmem:[%s1 + $0x48] sm:$0xf]
  %v88 = vld [vmem:[%s1 + $0x4c] sm:$0xf]
  %v89 = vld [vmem:[%s1 + $0x50] sm:$0xf]
  %v90 = vld [vmem:[%s1 + $0x54] sm:$0xf]
  %v91 = vld [vmem:[%s1 + $0x58] sm:$0xf]
  %v92 = vld [vmem:[%s1 + $0x5c] sm:$0xf]
  %v93 = vld [vmem:[%s1 + $0x60] sm:$0xf]
  %v94 = vld [vmem:[%s1 + $0x64] sm:$0xf]
  %v95 = vld [vmem:[%s1 + $0x68] sm:$0xf]
  %v96 = vld [vmem:[%s1 + $0x6c] sm:$0xf]
  %v97 = vld [vmem:[%s1 + $0x70] sm:$0xf]
  %v98 = vld [vmem:[%s1 + $0x74] sm:$0xf]
  %v99 = vld [vmem:[%s1 + $0x78] sm:$0xf]
  %v100 = vld [vmem:[%s1 + $0x7c] sm:$0xf]
  %v101 = vld [vmem:[%s1 + $0x80] sm:$0xf]
  %v102 = vld [vmem:[%s1 + $0x84] sm:$0xf]
  %v103 = vld [vmem:[%s1 + $0x88] sm:$0xf]
  %v104 = vld [vmem:[%s1 + $0x8c] sm:$0xf]
  %v105 = vld [vmem:[%s1 + $0x90] sm:$0xf]
  %v106 = vld [vmem:[%s1 + $0x94] sm:$0xf]
  %v107 = vld [vmem:[%s1 + $0x98] sm:$0xf]
  %v108 = vld [vmem:[%s1 + $0x9c] sm:$0xf]
  %v109 = vld [vmem:[%s1 + $0xa0] sm:$0xf]
  %v110 = vld [vmem:[%s1 + $0xa4] sm:$0xf]
  %v111 = vld [vmem:[%s1 + $0xa8] sm:$0xf]
  %v112 = vld [vmem:[%s1 + $0xac] sm:$0xf]
  %v113 = vld [vmem:[%s1 + $0xb0] sm:$0xf]
  %v114 = vld [vmem:[%s1 + $0xb4] sm:$0xf]
  %v115 = vld [vmem:[%s1 + $0xb8] sm:$0xf]
  %v116 = vld [vmem:[%s1 + $0xbc] sm:$0xf]
  %v117 = vld [vmem:[%s1 + $0xc0] sm:$0xf]
  %v118 = vld [vmem:[%s1 + $0xc4] sm:$0xf]
  %v119 = vld [vmem:[%s1 + $0xc8] sm:$0xf]
  %v120 = vld [vmem:[%s1 + $0xcc] sm:$0xf]
  %v121 = vld [vmem:[%s1 + $0xd0] sm:$0xf]
  %v122 = vld [vmem:[%s1 + $0xd4] sm:$0xf]
  %v123 = vld [vmem:[%s1 + $0xd8] sm:$0xf]
  %v124 = vld [vmem:[%s1 + $0xdc] sm:$0xf]
  %v125 = vld [vmem:[%s1 + $0xe0] sm:$0xf]
  %v126 = vld [vmem:[%s1 + $0xe4] sm:$0xf]
  %v127 = vld [vmem:[%s1 + $0xe8] sm:$0xf]
  %v128 = vld [vmem:[%s1 + $0xec] sm:$0xf]
  %v129 = vld [vmem:[%s1 + $0xf0] sm:$0xf]
  %v130 = vld [vmem:[%s1 + $0xf4] sm:$0xf]
  %v131 = vld [vmem:[%s1 + $0xf8] sm:$0xf]
  %v132 = vld [vmem:[%s1 + $0xfc] sm:$0xf]
  %v133 = vld [vmem:[%s1 + $0x100] sm:$0xf]
  %v134 = vld [vmem:[%s1 + $0x104] sm:$0xf]
  %v135 = vld [vmem:[%s1 + $0x108] sm:$0xf]
  %v136 = vld [vmem:[%s1 + $0x10c] sm:$0xf]
  %v137 = vld [vmem:[%s1 + $0x110] sm:$0xf]
  %v138 = vld [vmem:[%s1 + $0x114] sm:$0xf]
  %v139 = vld [vmem:[%s1 + $0x118] sm:$0xf]
  %v140 = vld [vmem:[%s1 + $0x11c] sm:$0xf]
  %v141 = vld [vmem:[%s1 + $0x120] sm:$0xf]
  %v142 = vld [vmem:[%s1 + $0x124] sm:$0xf]
  %v143 = vld [vmem:[%s1 + $0x128] sm:$0xf]
  %v144 = vld [vmem:[%s1 + $0x12c] sm:$0xf]
  %v145 = vld [vmem:[%s1 + $0x130] sm:$0xf]
  %v146 = vld [vmem:[%s1 + $0x134] sm:$0xf]
  %v147 = vld [vmem:[%s1 + $0x138] sm:$0xf]
  %v148 = vld [vmem:[%s1 + $0x13c] sm:$0xf]
  %v149 = vld [vmem:[%s1 + $0x140] sm:$0xf]
  %v150 = vld [vmem:[%s1 + $0x144] sm:$0xf]
  %v151 = vld [vmem:[%s1 + $0x148] sm:$0xf]
  %v152 = vld [vmem:[%s1 + $0x14c] sm:$0xf]
  %v153 = vld [vmem:[%s1 + $0x150] sm:$0xf]
  %v154 = vld [vmem:[%s1 + $0x154] sm:$0xf]
  %v155 = vld [vmem:[%s1 + $0x158] sm:$0xf]
  %v156 = vld [vmem:[%s1 + $0x15c] sm:$0xf]
  %v157 = vld [vmem:[%s1 + $0x160] sm:$0xf]
  %v158 = vld [vmem:[%s1 + $0x164] sm:$0xf]
  %v159 = vld [vmem:[%s1 + $0x168] sm:$0xf]
  %v160 = vld [vmem:[%s1 + $0x16c] sm:$0xf]
  %v161 = vld [vmem:[%s1 + $0x170] sm:$0xf]
  %v162 = vld [vmem:[%s1 + $0x174] sm:$0xf]
  %v163 = vld [vmem:[%s1 + $0x178] sm:$0xf]
  %v164 = vld [vmem:[%s1 + $0x17c] sm:$0xf]
  %v165 = vld [vmem:[%s1 + $0x180] sm:$0xf]
  %v166 = vld [vmem:[%s1 + $0x184] sm:$0xf]
  %v167 = vld [vmem:[%s1 + $0x188] sm:$0xf]
  %v168 = vld [vmem:[%s1 + $0x18c] sm:$0xf]
  %v169 = vld [vmem:[%s1 + $0x190] sm:$0xf]
  %v170 = vld [vmem:[%s1 + $0x194] sm:$0xf]
  %v171 = vld [vmem:[%s1 + $0x198] sm:$0xf]
  %v172 = vld [vmem:[%s1 + $0x19c] sm:$0xf]
  %v173 = vld [vmem:[%s1 + $0x1a0] sm:$0xf]
  %v174 = vld [vmem:[%s1 + $0x1a4] sm:$0xf]
  %v175 = vld [vmem:[%s1 + $0x1a8] sm:$0xf]
  %v176 = vld [vmem:[%s1 + $0x1ac] sm:$0xf]
  %v177 = vld [vmem:[%s1 + $0x1b0] sm:$0xf]
  %v178 = vld [vmem:[%s1 + $0x1b4] sm:$0xf]
  %v179 = vld [vmem:[%s1 + $0x1b8] sm:$0xf]
  %v180 = vld [vmem:[%s1 + $0x1bc] sm:$0xf]
  %v181 = vld [vmem:[%s1 + $0x1c0] sm:$0xf]
  %v182 = vld [vmem:[%s1 + $0x1c4] sm:$0xf]
  %v183 = vld [vmem:[%s1 + $0x1c8] sm:$0xf]
  %v184 = vld [vmem:[%s1 + $0x1cc] sm:$0xf]
  %v185 = vld [vmem:[%s1 + $0x1d0] sm:$0xf]
  %v186 = vld [vmem:[%s1 + $0x1d4] sm:$0xf]
  %v187 = vld [vmem:[%s1 + $0x1d8] sm:$0xf]
  %v188 = vld [vmem:[%s1 + $0x1dc] sm:$0xf]
  %v189 = vld [vmem:[%s1 + $0x1e0] sm:$0xf]
  %v190 = vld [vmem:[%s1 + $0x1e4] sm:$0xf]
  %v191 = vld [vmem:[%s1 + $0x1e8] sm:$0xf]
  %v192 = vld [vmem:[%s1 + $0x1ec] sm:$0xf]
  %v193 = vld [vmem:[%s1 + $0x1f0] sm:$0xf]
  %v194 = vld [vmem:[%s1 + $0x1f4] sm:$0xf]
  %v195 = vld [vmem:[%s1 + $0x1f8] sm:$0xf]
  %v196 = vld [vmem:[%s1 + $0x1fc] sm:$0xf]
  %v197 = vld [vmem:[%s2] sm:$0x1]
  %v199 = vperm.slane %v197, 0
  %v329 = vunpack.c.l.b16 %v69
  %v330 = vunpack.c.l.b16 %v70
  %v331 = vunpack.c.l.b16 %v71
  %v332 = vunpack.c.l.b16 %v72
  %v333 = vunpack.c.l.b16 %v73
  %v334 = vunpack.c.l.b16 %v74
  %v335 = vunpack.c.l.b16 %v75
  %v336 = vunpack.c.l.b16 %v76
  %v337 = vunpack.c.l.b16 %v77
  %v338 = vunpack.c.l.b16 %v78
  %v339 = vunpack.c.l.b16 %v79
  %v340 = vunpack.c.l.b16 %v80
  %v341 = vunpack.c.l.b16 %v81
  %v342 = vunpack.c.l.b16 %v82
  %v343 = vunpack.c.l.b16 %v83
  %v344 = vunpack.c.l.b16 %v84
  %v345 = vunpack.c.l.b16 %v85
  %v346 = vunpack.c.l.b16 %v86
  %v347 = vunpack.c.l.b16 %v87
  %v348 = vunpack.c.l.b16 %v88
  %v349 = vunpack.c.l.b16 %v89
  %v350 = vunpack.c.l.b16 %v90
  %v351 = vunpack.c.l.b16 %v91
  %v352 = vunpack.c.l.b16 %v92
  %v353 = vunpack.c.l.b16 %v93
  %v354 = vunpack.c.l.b16 %v94
  %v355 = vunpack.c.l.b16 %v95
  %v356 = vunpack.c.l.b16 %v96
  %v357 = vunpack.c.l.b16 %v97
  %v358 = vunpack.c.l.b16 %v98
  %v359 = vunpack.c.l.b16 %v99
  %v360 = vunpack.c.l.b16 %v100
  %v361 = vunpack.c.l.b16 %v101
  %v362 = vunpack.c.l.b16 %v102
  %v363 = vunpack.c.l.b16 %v103
  %v364 = vunpack.c.l.b16 %v104
  %v365 = vunpack.c.l.b16 %v105
  %v366 = vunpack.c.l.b16 %v106
  %v367 = vunpack.c.l.b16 %v107
  %v368 = vunpack.c.l.b16 %v108
  %v369 = vunpack.c.l.b16 %v109
  %v370 = vunpack.c.l.b16 %v110
  %v371 = vunpack.c.l.b16 %v111
  %v372 = vunpack.c.l.b16 %v112
  %v373 = vunpack.c.l.b16 %v113
  %v374 = vunpack.c.l.b16 %v114
  %v375 = vunpack.c.l.b16 %v115
  %v376 = vunpack.c.l.b16 %v116
  %v377 = vunpack.c.l.b16 %v117
  %v378 = vunpack.c.l.b16 %v118
  %v379 = vunpack.c.l.b16 %v119
  %v380 = vunpack.c.l.b16 %v120
  %v381 = vunpack.c.l.b16 %v121
  %v382 = vunpack.c.l.b16 %v122
  %v383 = vunpack.c.l.b16 %v123
  %v384 = vunpack.c.l.b16 %v124
  %v385 = vunpack.c.l.b16 %v125
  %v386 = vunpack.c.l.b16 %v126
  %v387 = vunpack.c.l.b16 %v127
  %v388 = vunpack.c.l.b16 %v128
  %v389 = vunpack.c.l.b16 %v129
  %v390 = vunpack.c.l.b16 %v130
  %v391 = vunpack.c.l.b16 %v131
  %v392 = vunpack.c.l.b16 %v132
  %v393 = vunpack.c.l.b16 %v133
  %v394 = vunpack.c.l.b16 %v134
  %v395 = vunpack.c.l.b16 %v135
  %v396 = vunpack.c.l.b16 %v136
  %v397 = vunpack.c.l.b16 %v137
  %v398 = vunpack.c.l.b16 %v138
  %v399 = vunpack.c.l.b16 %v139
  %v400 = vunpack.c.l.b16 %v140
  %v401 = vunpack.c.l.b16 %v141
  %v402 = vunpack.c.l.b16 %v142
  %v403 = vunpack.c.l.b16 %v143
  %v404 = vunpack.c.l.b16 %v144
  %v405 = vunpack.c.l.b16 %v145
  %v406 = vunpack.c.l.b16 %v146
  %v407 = vunpack.c.l.b16 %v147
  %v408 = vunpack.c.l.b16 %v148
  %v409 = vunpack.c.l.b16 %v149
  %v410 = vunpack.c.l.b16 %v150
  %v411 = vunpack.c.l.b16 %v151
  %v412 = vunpack.c.l.b16 %v152
  %v413 = vunpack.c.l.b16 %v153
  %v414 = vunpack.c.l.b16 %v154
  %v415 = vunpack.c.l.b16 %v155
  %v416 = vunpack.c.l.b16 %v156
  %v417 = vunpack.c.l.b16 %v157
  %v418 = vunpack.c.l.b16 %v158
  %v419 = vunpack.c.l.b16 %v159
  %v420 = vunpack.c.l.b16 %v160
  %v421 = vunpack.c.l.b16 %v161
  %v422 = vunpack.c.l.b16 %v162
  %v423 = vunpack.c.l.b16 %v163
  %v424 = vunpack.c.l.b16 %v164
  %v425 = vunpack.c.l.b16 %v165
  %v426 = vunpack.c.l.b16 %v166
  %v427 = vunpack.c.l.b16 %v167
  %v428 = vunpack.c.l.b16 %v168
  %v429 = vunpack.c.l.b16 %v169
  %v430 = vunpack.c.l.b16 %v170
  %v431 = vunpack.c.l.b16 %v171
  %v432 = vunpack.c.l.b16 %v172
  %v433 = vunpack.c.l.b16 %v173
  %v434 = vunpack.c.l.b16 %v174
  %v435 = vunpack.c.l.b16 %v175
  %v436 = vunpack.c.l.b16 %v176
  %v437 = vunpack.c.l.b16 %v177
  %v438 = vunpack.c.l.b16 %v178
  %v439 = vunpack.c.l.b16 %v179
  %v440 = vunpack.c.l.b16 %v180
  %v441 = vunpack.c.l.b16 %v181
  %v442 = vunpack.c.l.b16 %v182
  %v443 = vunpack.c.l.b16 %v183
  %v444 = vunpack.c.l.b16 %v184
  %v445 = vunpack.c.l.b16 %v185
  %v446 = vunpack.c.l.b16 %v186
  %v447 = vunpack.c.l.b16 %v187
  %v448 = vunpack.c.l.b16 %v188
  %v449 = vunpack.c.l.b16 %v189
  %v450 = vunpack.c.l.b16 %v190
  %v451 = vunpack.c.l.b16 %v191
  %v452 = vunpack.c.l.b16 %v192
  %v453 = vunpack.c.l.b16 %v193
  %v454 = vunpack.c.l.b16 %v194
  %v455 = vunpack.c.l.b16 %v195
  %v456 = vunpack.c.l.b16 %v196
  %v457 = vpack.c.b16 %v330, %v329
  %v458 = vpack.c.b16 %v332, %v331
  %v459 = vpack.c.b16 %v334, %v333
  %v460 = vpack.c.b16 %v336, %v335
  %v461 = vpack.c.b16 %v338, %v337
  %v462 = vpack.c.b16 %v340, %v339
  %v463 = vpack.c.b16 %v342, %v341
  %v464 = vpack.c.b16 %v344, %v343
  %v465 = vpack.c.b16 %v346, %v345
  %v466 = vpack.c.b16 %v348, %v347
  %v467 = vpack.c.b16 %v350, %v349
  %v468 = vpack.c.b16 %v352, %v351
  %v469 = vpack.c.b16 %v354, %v353
  %v470 = vpack.c.b16 %v356, %v355
  %v471 = vpack.c.b16 %v358, %v357
  %v472 = vpack.c.b16 %v360, %v359
  %v473 = vpack.c.b16 %v362, %v361
  %v474 = vpack.c.b16 %v364, %v363
  %v475 = vpack.c.b16 %v366, %v365
  %v476 = vpack.c.b16 %v368, %v367
  %v477 = vpack.c.b16 %v370, %v369
  %v478 = vpack.c.b16 %v372, %v371
  %v479 = vpack.c.b16 %v374, %v373
  %v480 = vpack.c.b16 %v376, %v375
  %v481 = vpack.c.b16 %v378, %v377
  %v482 = vpack.c.b16 %v380, %v379
  %v483 = vpack.c.b16 %v382, %v381
  %v484 = vpack.c.b16 %v384, %v383
  %v485 = vpack.c.b16 %v386, %v385
  %v486 = vpack.c.b16 %v388, %v387
  %v487 = vpack.c.b16 %v390, %v389
  %v488 = vpack.c.b16 %v392, %v391
  %v489 = vpack.c.b16 %v394, %v393
  %v490 = vpack.c.b16 %v396, %v395
  %v491 = vpack.c.b16 %v398, %v397
  %v492 = vpack.c.b16 %v400, %v399
  %v493 = vpack.c.b16 %v402, %v401
  %v494 = vpack.c.b16 %v404, %v403
  %v495 = vpack.c.b16 %v406, %v405
  %v496 = vpack.c.b16 %v408, %v407
  %v497 = vpack.c.b16 %v410, %v409
  %v498 = vpack.c.b16 %v412, %v411
  %v499 = vpack.c.b16 %v414, %v413
  %v500 = vpack.c.b16 %v416, %v415
  %v501 = vpack.c.b16 %v418, %v417
  %v502 = vpack.c.b16 %v420, %v419
  %v503 = vpack.c.b16 %v422, %v421
  %v504 = vpack.c.b16 %v424, %v423
  %v505 = vpack.c.b16 %v426, %v425
  %v506 = vpack.c.b16 %v428, %v427
  %v507 = vpack.c.b16 %v430, %v429
  %v508 = vpack.c.b16 %v432, %v431
  %v509 = vpack.c.b16 %v434, %v433
  %v510 = vpack.c.b16 %v436, %v435
  %v511 = vpack.c.b16 %v438, %v437
  %v512 = vpack.c.b16 %v440, %v439
  %v513 = vpack.c.b16 %v442, %v441
  %v514 = vpack.c.b16 %v444, %v443
  %v515 = vpack.c.b16 %v446, %v445
  %v516 = vpack.c.b16 %v448, %v447
  %v517 = vpack.c.b16 %v450, %v449
  %v518 = vpack.c.b16 %v452, %v451
  %v519 = vpack.c.b16 %v454, %v453
  %v520 = vpack.c.b16 %v456, %v455
  %585 = vmatpush.bf16.msra.mxu0 %v464
  %586 = vmatpush.bf16.msra.mxu0 %v463
  %587 = vmatpush.bf16.msra.mxu0 %v462
  %588 = vmatpush.bf16.msra.mxu0 %v461
  %589 = vmatpush.bf16.msra.mxu0 %v460
  %590 = vmatpush.bf16.msra.mxu0 %v459
  %591 = vmatpush.bf16.msra.mxu0 %v458
  %592 = vmatpush.bf16.msra.mxu0 %v457
  %593 = vmatmul.bf16.gmra.mxu0 %v61
  %v594 = vpop.f32.mrf.mxu0
  %v595 = vadd.f32 %v199, %v594
  %v596 = vpop.f32.mrf.mxu0
  %597 = vdwg.mxu0
  %598 = vmatpush.bf16.msra.mxu0 %v472
  %599 = vmatpush.bf16.msra.mxu0 %v471
  %600 = vmatpush.bf16.msra.mxu0 %v470
  %601 = vmatpush.bf16.msra.mxu0 %v469
  %602 = vmatpush.bf16.msra.mxu0 %v468
  %603 = vmatpush.bf16.msra.mxu0 %v467
  %604 = vmatpush.bf16.msra.mxu0 %v466
  %605 = vmatpush.bf16.msra.mxu0 %v465
  %606 = vmatmul.bf16.gmra.mxu0 %v62
  %v607 = vpop.f32.mrf.mxu0
  %v608 = vadd.f32 %v595, %v607
  %v609 = vpop.f32.mrf.mxu0
  %610 = vdwg.mxu0
  %611 = vmatpush.bf16.msra.mxu0 %v480
  %612 = vmatpush.bf16.msra.mxu0 %v479
  %613 = vmatpush.bf16.msra.mxu0 %v478
  %614 = vmatpush.bf16.msra.mxu0 %v477
  %615 = vmatpush.bf16.msra.mxu0 %v476
  %616 = vmatpush.bf16.msra.mxu0 %v475
  %617 = vmatpush.bf16.msra.mxu0 %v474
  %618 = vmatpush.bf16.msra.mxu0 %v473
  %619 = vmatmul.bf16.gmra.mxu0 %v63
  %v620 = vpop.f32.mrf.mxu0
  %v621 = vadd.f32 %v608, %v620
  %v622 = vpop.f32.mrf.mxu0
  %623 = vdwg.mxu0
  %624 = vmatpush.bf16.msra.mxu0 %v488
  %625 = vmatpush.bf16.msra.mxu0 %v487
  %626 = vmatpush.bf16.msra.mxu0 %v486
  %627 = vmatpush.bf16.msra.mxu0 %v485
  %628 = vmatpush.bf16.msra.mxu0 %v484
  %629 = vmatpush.bf16.msra.mxu0 %v483
  %630 = vmatpush.bf16.msra.mxu0 %v482
  %631 = vmatpush.bf16.msra.mxu0 %v481
  %632 = vmatmul.bf16.gmra.mxu0 %v64
  %v633 = vpop.f32.mrf.mxu0
  %v634 = vadd.f32 %v621, %v633
  %v635 = vpop.f32.mrf.mxu0
  %636 = vdwg.mxu0
  %637 = vmatpush.bf16.msra.mxu0 %v496
  %638 = vmatpush.bf16.msra.mxu0 %v495
  %639 = vmatpush.bf16.msra.mxu0 %v494
  %640 = vmatpush.bf16.msra.mxu0 %v493
  %641 = vmatpush.bf16.msra.mxu0 %v492
  %642 = vmatpush.bf16.msra.mxu0 %v491
  %643 = vmatpush.bf16.msra.mxu0 %v490
  %644 = vmatpush.bf16.msra.mxu0 %v489
  %645 = vmatmul.bf16.gmra.mxu0 %v65
  %v646 = vpop.f32.mrf.mxu0
  %v647 = vadd.f32 %v634, %v646
  %v648 = vpop.f32.mrf.mxu0
  %649 = vdwg.mxu0
  %650 = vmatpush.bf16.msra.mxu0 %v504
  %651 = vmatpush.bf16.msra.mxu0 %v503
  %652 = vmatpush.bf16.msra.mxu0 %v502
  %653 = vmatpush.bf16.msra.mxu0 %v501
  %654 = vmatpush.bf16.msra.mxu0 %v500
  %655 = vmatpush.bf16.msra.mxu0 %v499
  %656 = vmatpush.bf16.msra.mxu0 %v498
  %657 = vmatpush.bf16.msra.mxu0 %v497
  %658 = vmatmul.bf16.gmra.mxu0 %v66
  %v659 = vpop.f32.mrf.mxu0
  %v660 = vadd.f32 %v647, %v659
  %v661 = vpop.f32.mrf.mxu0
  %662 = vdwg.mxu0
  %663 = vmatpush.bf16.msra.mxu0 %v512
  %664 = vmatpush.bf16.msra.mxu0 %v511
  %665 = vmatpush.bf16.msra.mxu0 %v510
  %666 = vmatpush.bf16.msra.mxu0 %v509
  %667 = vmatpush.bf16.msra.mxu0 %v508
  %668 = vmatpush.bf16.msra.mxu0 %v507
  %669 = vmatpush.bf16.msra.mxu0 %v506
  %670 = vmatpush.bf16.msra.mxu0 %v505
  %671 = vmatmul.bf16.gmra.mxu0 %v67
  %v672 = vpop.f32.mrf.mxu0
  %v673 = vadd.f32 %v660, %v672
  %v674 = vpop.f32.mrf.mxu0
  %675 = vdwg.mxu0
  %676 = vmatpush.bf16.msra.mxu0 %v520
  %677 = vmatpush.bf16.msra.mxu0 %v519
  %678 = vmatpush.bf16.msra.mxu0 %v518
  %679 = vmatpush.bf16.msra.mxu0 %v517
  %680 = vmatpush.bf16.msra.mxu0 %v516
  %681 = vmatpush.bf16.msra.mxu0 %v515
  %682 = vmatpush.bf16.msra.mxu0 %v514
  %683 = vmatpush.bf16.msra.mxu0 %v513
  %684 = vmatmul.bf16.gmra.mxu0 %v68
  %v685 = vpop.f32.mrf.mxu0
  %v686 = vadd.f32 %v673, %v685
  %v687 = vpop.f32.mrf.mxu0
  %688 = vdwg.mxu0
  %689 = vst [vmem:[%s3] sm:$0xff] %v686
  // Predicated region
  $region14: #{early_exit_block.1} parent=0 // pred_check
    _
  $region15: #{early_exit_block.1} parent=0 // pred_check_branch
    %691 = sbr.rel (0) target = $region17
  $region16: #{early_exit_block.1} parent=0 // pred_region
    _
  $region17: #{early_exit_block.1} parent=0 // pred_fallthru
    _
  // Predicated region
  $region18: #{early_exit_block.1} parent=0 // pred_check
    _
  $region19: #{early_exit_block.1} parent=0 // pred_check_branch
    %693 = sbr.rel (0) target = $region21
  $region20: #{early_exit_block.1} parent=0 // pred_region
    _
  $region21: #{early_exit_block.1} parent=0 // pred_fallthru
    _

</llo_original>
